<compile_context>
chip_gen: v7x
topology: tpu7x:2x2x1
jax: 0.10.0
libtpu: 0.0.40
codegen_flags: <defaults>
</compile_context>

<pallas_src>
import functools

import jax
import jax.numpy as jnp
from jax import lax
from jax.experimental import pallas as pl
from jax.experimental.pallas import tpu as pltpu


def _round_up(x, m):
    return ((x + m - 1) // m) * m


def _pick_tile(m_pad, target):
    """Largest multiple of 128 that is <= target and divides m_pad."""
    t = min(target, m_pad)
    t = (t // 128) * 128
    t = max(t, 128)
    while m_pad % t != 0:
        t -= 128
    return t


def _edge_decoder_kernel(zr_ref, zc_ref, out_ref, *, n, tm, tn, zc_resident):
    """One (tm, tn) output tile of sigmoid(z @ z.T) with masking.

    zr_ref: (tm, Kp) row-block of padded z
    zc_ref: (tn, Kp) col-block of padded z, or the whole (Mp, Kp) z if resident
    out_ref: (tm, tn) output tile
    n: static number of valid (actual) nodes
    """
    i = pl.program_id(0)
    j = pl.program_id(1)
    row0 = i * tm
    col0 = j * tn

    # Tile entirely outside the valid (n x n) region: just write zeros,
    # skip the matmul / sigmoid entirely (the zero border is part of the
    # module's output contract, so the store itself is required work).
    fully_padded = jnp.logical_or(row0 >= n, col0 >= n)

    @pl.when(fully_padded)
    def _():
        out_ref[...] = jnp.zeros_like(out_ref)

    @pl.when(jnp.logical_not(fully_padded))
    def _():
        zr = zr_ref[...]
        if zc_resident:
            # Whole z is VMEM-resident (loaded once); slice the column chunk.
            start = pl.multiple_of(col0, tn)
            zc = zc_ref[pl.ds(start, tn), :]
        else:
            zc = zc_ref[...]

        # A @ B^T form: contract the last dim of both operands so no explicit
        # transpose of the z block is materialized (MXU-direct, XLU idle).
        s = lax.dot_general(
            zr, zc,
            dimension_numbers=(((1,), (1,)), ((), ())),
            preferred_element_type=jnp.float32,
        )
        # jax.nn.sigmoid lowers to the EUP logistic (single transcendental slot).
        adj = jax.nn.sigmoid(s)

        fully_valid = jnp.logical_and(row0 + tm <= n, col0 + tn <= n)
        hits_diag = jnp.logical_and(row0 < col0 + tn, col0 < row0 + tm)
        interior = jnp.logical_and(fully_valid, jnp.logical_not(hits_diag))

        # Interior, fully valid, off-diagonal tile: no masking VPU work at all.
        @pl.when(interior)
        def _():
            out_ref[...] = adj.astype(out_ref.dtype)

        # Boundary and/or diagonal tile: apply validity + off-diagonal mask.
        @pl.when(jnp.logical_not(interior))
        def _():
            row = lax.broadcasted_iota(jnp.int32, (tm, tn), 0) + row0
            col = lax.broadcasted_iota(jnp.int32, (tm, tn), 1) + col0
            mask = (row < n) & (col < n) & (row != col)
            out_ref[...] = jnp.where(mask, adj, 0.0).astype(out_ref.dtype)


def bilinear_edge_decoder(z, max_nodes, *, input_dtype=jnp.bfloat16,
                          out_dtype=jnp.float32, tm=512, tn=1024,
                          zc_resident=None):
    """z: (actual_nodes, hidden). Returns (max_nodes, max_nodes) adjacency.

    input_dtype=bf16 by default (MXU-native, halves input DMA bytes); the
    contraction still accumulates in f32. Pass input_dtype=jnp.float32 for
    bit-faithful parity with the PyTorch module. out_dtype=f32 matches the
    module; bf16 halves the dominant output-writeback traffic if tolerated.
    Note: actual_nodes (= z.shape[0]) is baked statically; distinct node
    counts recompile under jit.
    """
    actual_nodes, hidden = z.shape
    assert 0 < actual_nodes <= max_nodes

    # Pad everything to lane/sublane friendly sizes.
    m_pad = _round_up(max_nodes, 128)
    k_pad = _round_up(hidden, 128)
    tm = _pick_tile(m_pad, tm)
    tn = _pick_tile(m_pad, tn)

    in_itemsize = jnp.dtype(input_dtype).itemsize
    out_itemsize = jnp.dtype(out_dtype).itemsize

    # Keep the whole column operand VMEM-resident (loaded once) when small.
    if zc_resident is None:
        zc_resident = m_pad * k_pad * in_itemsize <= (4 << 20)

    z_p = jnp.zeros((m_pad, k_pad), dtype=input_dtype)
    z_p = z_p.at[:actual_nodes, :hidden].set(z.astype(input_dtype))

    n = actual_nodes
    last_i = (n - 1) // tm   # last row-block touching valid rows
    last_j = (n - 1) // tn   # last col-block touching valid cols

    # Clamp dead-tile block indices: consecutive grid steps with an unchanged
    # block index skip the input DMA, so fully-padded tiles stop re-fetching z.
    zr_spec = pl.BlockSpec((tm, k_pad), lambda i, j: (jnp.minimum(i, last_i), 0))
    if zc_resident:
        zc_spec = pl.BlockSpec((m_pad, k_pad), lambda i, j: (0, 0))
        zc_bytes = 2 * m_pad * k_pad * in_itemsize
    else:
        zc_spec = pl.BlockSpec((tn, k_pad), lambda i, j: (jnp.minimum(j, last_j), 0))
        zc_bytes = 2 * tn * k_pad * in_itemsize

    # Double-buffered VMEM footprint + headroom (v5e scoped default is 16 MiB).
    zr_bytes = 2 * tm * k_pad * in_itemsize
    out_bytes = 2 * tm * tn * out_itemsize
    vmem_limit = int(min(max(zr_bytes + zc_bytes + out_bytes + (4 << 20),
                             32 << 20), 64 << 20))

    grid = (m_pad // tm, m_pad // tn)
    kernel = functools.partial(
        _edge_decoder_kernel, n=n, tm=tm, tn=tn, zc_resident=zc_resident)

    out_padded = pl.pallas_call(
        kernel,
        out_shape=jax.ShapeDtypeStruct((m_pad, m_pad), out_dtype),
        grid_spec=pltpu.PrefetchScalarGridSpec(
            num_scalar_prefetch=0,
            grid=grid,
            in_specs=[zr_spec, zc_spec],
            out_specs=pl.BlockSpec((tm, tn), lambda i, j: (i, j)),
        ),
        compiler_params=pltpu.CompilerParams(
            dimension_semantics=("parallel", "parallel"),
            vmem_limit_bytes=vmem_limit,
        ),
    )(z_p, z_p)

    if m_pad == max_nodes:
        # No trailing slice -> XLA does not materialize a full-matrix copy.
        return out_padded
    # max_nodes not 128-aligned: slice is unavoidable to match the module's
    # exact output shape (prefer 128-aligned max_nodes to avoid this copy).
    return out_padded[:max_nodes, :max_nodes]


def _reference(z, max_nodes):
    n = z.shape[0]
    adj = jax.nn.sigmoid(z.astype(jnp.float32) @ z.astype(jnp.float32).T)
    adj = adj * (1.0 - jnp.eye(n, dtype=adj.dtype))
    out = jnp.zeros((max_nodes, max_nodes), dtype=jnp.float32)
    return out.at[:n, :n].set(adj)


if __name__ == "__main__":
    key = jax.random.PRNGKey(0)

    # --- Small case matching the module's typical use (single tile) ---------
    max_nodes = 16
    actual_nodes = 12
    hidden = 32
    z = jax.random.normal(key, (actual_nodes, hidden), dtype=jnp.float32)
    ref = _reference(z, max_nodes)

    # Default path: bf16 MXU inputs, f32 accumulation, f32 output.
    out = jax.block_until_ready(bilinear_edge_decoder(z, max_nodes))
    assert out.shape == (max_nodes, max_nodes)
    assert out.dtype == jnp.float32
    assert jnp.allclose(out, ref, atol=5e-2), "bf16-input mismatch (small)"

    # Exact-f32 path (bit-faithful to the PyTorch module's math).
    out_f32 = jax.block_until_ready(
        bilinear_edge_decoder(z, max_nodes, input_dtype=jnp.float32))
    assert jnp.allclose(out_f32, ref, atol=1e-5, rtol=1e-5), "f32 mismatch (small)"

    # --- Multi-tile case exercising interior / boundary / diagonal / dead
    #     tile classification (grid 4x4 with 128x128 tiles) -------------------
    max_nodes2 = 512
    actual_nodes2 = 300
    hidden2 = 64
    z2 = jax.random.normal(jax.random.PRNGKey(0), (actual_nodes2, hidden2),
                           dtype=jnp.float32)
    ref2 = _reference(z2, max_nodes2)

    # f32, resident-zc path (tight tolerance).
    out2 = jax.block_until_ready(
        bilinear_edge_decoder(z2, max_nodes2, input_dtype=jnp.float32,
                              tm=128, tn=128))
    assert out2.shape == (max_nodes2, max_nodes2)
    assert jnp.allclose(out2, ref2, atol=1e-5, rtol=1e-5), "f32 mismatch (tiled)"

    # f32, streamed-zc path (exercises the non-resident BlockSpec).
    out2s = jax.block_until_ready(
        bilinear_edge_decoder(z2, max_nodes2, input_dtype=jnp.float32,
                              tm=128, tn=128, zc_resident=False))
    assert jnp.allclose(out2s, ref2, atol=1e-5, rtol=1e-5), "f32 mismatch (streamed)"

    # Default large tiles + bf16 inputs + bf16 output (roofline path).
    out2b = jax.block_until_ready(
        bilinear_edge_decoder(z2, max_nodes2, out_dtype=jnp.bfloat16))
    assert out2b.dtype == jnp.bfloat16
    assert jnp.allclose(out2b.astype(jnp.float32), ref2, atol=5e-2), \
        "bf16 mismatch (tiled)"

    print("KERNEL_OK")
</pallas_src>

<mosaic_0001>
module attributes {stable_mosaic.version = 11 : i64} {
  func.func @_edge_decoder_kernel(%arg0: i32, %arg1: i32, %arg2: memref<128x128xbf16, #tpu.memory_space<vmem>>, %arg3: memref<128x128xbf16, #tpu.memory_space<vmem>>, %arg4: memref<128x128xf32, #tpu.memory_space<vmem>>) attributes {dimension_semantics = [#tpu.dimension_semantics<parallel>, #tpu.dimension_semantics<parallel>], iteration_bounds = array<i64: 1, 1>, scalar_prefetch = 0 : i64, scratch_operands = 0 : i64, tpu.core_type = #tpu.core_type<tc>, window_params = [{transform_indices = @transform_0, window_bounds = array<i64: 128, 128>}, {pipeline_mode = #tpu.pipeline_mode<synchronous>, transform_indices = @transform_1, window_bounds = array<i64: 128, 128>}, {transform_indices = @transform_2, window_bounds = array<i64: 128, 128>}]} {
    %c128_i32 = arith.constant 128 : i32
    %0 = arith.muli %arg0, %c128_i32 : i32
    %c128_i32_0 = arith.constant 128 : i32
    %1 = arith.muli %arg1, %c128_i32_0 : i32
    %c12_i32 = arith.constant 12 : i32
    %2 = arith.cmpi sge, %0, %c12_i32 : i32
    %c12_i32_1 = arith.constant 12 : i32
    %3 = arith.cmpi sge, %1, %c12_i32_1 : i32
    %4 = arith.ori %2, %3 : i1
    %5 = arith.extui %4 : i1 to i32
    %c0_i32 = arith.constant 0 : i32
    %6 = arith.cmpi ne, %5, %c0_i32 : i32
    scf.if %6 {
      %cst = arith.constant 0.000000e+00 : f32
      %10 = vector.broadcast %cst : f32 to vector<128x128xf32>
      %c0 = arith.constant 0 : index
      %c0_3 = arith.constant 0 : index
      %11 = vector.load %arg4[%c0, %c0_3] : memref<128x128xf32, #tpu.memory_space<vmem>>, vector<128x128xf32>
      tpu.vector_store %arg4[%c0, %c0_3], %10 {strides = array<i32>} : memref<128x128xf32, #tpu.memory_space<vmem>>, vector<128x128xf32>,
    } else {
    }
    %true = arith.constant true
    %7 = arith.xori %4, %true : i1
    %8 = arith.extui %7 : i1 to i32
    %c0_i32_2 = arith.constant 0 : i32
    %9 = arith.cmpi ne, %8, %c0_i32_2 : i32
    scf.if %9 {
      %c0 = arith.constant 0 : index
      %c0_3 = arith.constant 0 : index
      %10 = vector.load %arg2[%c0, %c0_3] : memref<128x128xbf16, #tpu.memory_space<vmem>>, vector<128x128xbf16>
      %11 = tpu.assume_multiple %1, 128 : i32
      %12 = arith.index_cast %11 : i32 to index
      %c0_4 = arith.constant 0 : index
      %13 = vector.load %arg3[%12, %c0_4] : memref<128x128xbf16, #tpu.memory_space<vmem>>, vector<128x128xbf16>
      %cst = arith.constant dense<0.000000e+00> : vector<128x128xf32>
      %14 = tpu.matmul %10, %13, %cst {dimension_numbers = #tpu.dot_dimension_numbers<[1], [1], [0], [0], [0, 0, 1, 0], [], []>} : vector<128x128xbf16>, vector<128x128xbf16>, vector<128x128xf32> -> vector<128x128xf32>
      %15 = arith.negf %14 : vector<128x128xf32>
      %16 = math.exp %15 : vector<128x128xf32>
      %cst_5 = arith.constant 1.000000e+00 : f32
      %17 = vector.broadcast %cst_5 : f32 to vector<128x128xf32>
      %18 = arith.addf %17, %16 : vector<128x128xf32>
      %19 = arith.divf %17, %18 : vector<128x128xf32>
      %c128_i32_6 = arith.constant 128 : i32
      %20 = arith.addi %0, %c128_i32_6 : i32
      %c12_i32_7 = arith.constant 12 : i32
      %21 = arith.cmpi sle, %20, %c12_i32_7 : i32
      %c128_i32_8 = arith.constant 128 : i32
      %22 = arith.addi %1, %c128_i32_8 : i32
      %c12_i32_9 = arith.constant 12 : i32
      %23 = arith.cmpi sle, %22, %c12_i32_9 : i32
      %24 = arith.andi %21, %23 : i1
      %c128_i32_10 = arith.constant 128 : i32
      %25 = arith.addi %1, %c128_i32_10 : i32
      %26 = arith.cmpi slt, %0, %25 : i32
      %c128_i32_11 = arith.constant 128 : i32
      %27 = arith.addi %0, %c128_i32_11 : i32
      %28 = arith.cmpi slt, %1, %27 : i32
      %29 = arith.andi %26, %28 : i1
      %true_12 = arith.constant true
      %30 = arith.xori %29, %true_12 : i1
      %31 = arith.andi %24, %30 : i1
      %32 = arith.extui %31 : i1 to i32
      %c0_i32_13 = arith.constant 0 : i32
      %33 = arith.cmpi ne, %32, %c0_i32_13 : i32
      scf.if %33 {
        %c0_16 = arith.constant 0 : index
        %c0_17 = arith.constant 0 : index
        %37 = vector.load %arg4[%c0_16, %c0_17] : memref<128x128xf32, #tpu.memory_space<vmem>>, vector<128x128xf32>
        tpu.vector_store %arg4[%c0_16, %c0_17], %19 {strides = array<i32>} : memref<128x128xf32, #tpu.memory_space<vmem>>, vector<128x128xf32>,
      } else {
      }
      %true_14 = arith.constant true
      %34 = arith.xori %31, %true_14 : i1
      %35 = arith.extui %34 : i1 to i32
      %c0_i32_15 = arith.constant 0 : i32
      %36 = arith.cmpi ne, %35, %c0_i32_15 : i32
      scf.if %36 {
        %37 = tpu.iota {dimensions = array<i32: 0>} : vector<128x128xi32>
        %38 = vector.broadcast %0 : i32 to vector<128x128xi32>
        %39 = arith.addi %37, %38 : vector<128x128xi32>
        %40 = tpu.iota {dimensions = array<i32: 1>} : vector<128x128xi32>
        %41 = vector.broadcast %1 : i32 to vector<128x128xi32>
        %42 = arith.addi %40, %41 : vector<128x128xi32>
        %c12_i32_16 = arith.constant 12 : i32
        %43 = vector.broadcast %c12_i32_16 : i32 to vector<128x128xi32>
        %44 = arith.cmpi slt, %39, %43 : vector<128x128xi32>
        %c12_i32_17 = arith.constant 12 : i32
        %45 = vector.broadcast %c12_i32_17 : i32 to vector<128x128xi32>
        %46 = arith.cmpi slt, %42, %45 : vector<128x128xi32>
        %47 = arith.andi %44, %46 : vector<128x128xi1>
        %48 = arith.cmpi ne, %39, %42 : vector<128x128xi32>
        %49 = arith.andi %47, %48 : vector<128x128xi1>
        %cst_18 = arith.constant 0.000000e+00 : f32
        %50 = vector.broadcast %cst_18 : f32 to vector<128x128xf32>
        %51 = arith.select %49, %19, %50 : vector<128x128xi1>, vector<128x128xf32>
        %c0_19 = arith.constant 0 : index
        %c0_20 = arith.constant 0 : index
        %52 = vector.load %arg4[%c0_19, %c0_20] : memref<128x128xf32, #tpu.memory_space<vmem>>, vector<128x128xf32>
        tpu.vector_store %arg4[%c0_19, %c0_20], %51 {strides = array<i32>} : memref<128x128xf32, #tpu.memory_space<vmem>>, vector<128x128xf32>,
      } else {
      }
    } else {
    }
    return
  }
  func.func @transform_0(%arg0: i32, %arg1: i32) -> (i32, i32) {
    %c0_i32 = arith.constant 0 : i32
    %0 = arith.minsi %arg0, %c0_i32 : i32
    %c0_i32_0 = arith.constant 0 : i32
    %c0_i32_1 = arith.constant 0 : i32
    return %0, %c0_i32_0 : i32, i32
  }
  func.func @transform_1(%arg0: i32, %arg1: i32) -> (i32, i32) {
    %c0_i32 = arith.constant 0 : i32
    %c0_i32_0 = arith.constant 0 : i32
    %c0_i32_1 = arith.constant 0 : i32
    return %c0_i32, %c0_i32_0 : i32, i32
  }
  func.func @transform_2(%arg0: i32, %arg1: i32) -> (i32, i32) {
    %c0_i32 = arith.constant 0 : i32
    return %arg0, %arg1 : i32, i32
  }
}

</mosaic_0001>

<llo_original>
// kernel: tpu_custom_call.1
$region0: #{tpu_custom_call.1}
  #allocation0 [shape = 'u32[]', space=smem, size = 0x4, offset = 0x4, fixed_abs, tag = 'smem constant byte address 0x4 - core index']
  #allocation1 [shape = 'u32[144,128]{1,0:T(1,128)}', space=vmem, size = 0x12000, scoped, tag = 'internal scratch']
  %s0 = inlined_call_operand.hbm [shape: bf16[128,128], index: 0, kind: input, shape index: {}]
  %s1 = inlined_call_operand.hbm [shape: bf16[128,128], index: 1, kind: input, shape index: {}]
  %s2 = inlined_call_operand.hbm [shape: f32[128,128], index: 2, kind: output, shape index: {}]
  %s3 = sld [smem:[#allocation0]]
  $region42: #{tpu_custom_call.1} parent=0
    _
  %s5 = ssub.s32 1, %s3
  %s6 = scalar_select 0, %s5, %s3
  $region1: #{tpu_custom_call.1} parent=0
    #allocation2 [shape = 'u8[32768]{0}', space=vmem, size = 0x8000, scoped, tag = 'input window, operand 0, single buffered']
    #allocation3 [shape = 's32[1]{0}', space=sflag, size = 0x4, scoped, tag = 'scoped memory for tpu_custom_call.1']
    #allocation4 [shape = 's32[1]{0}', space=sflag, size = 0x4, scoped, tag = 'scoped memory for tpu_custom_call.1']
    #allocation5 [shape = 'u8[32768]{0}', space=vmem, size = 0x8000, scoped, tag = 'input window, operand 1, single buffered']
    #allocation6 [shape = 's32[1]{0}', space=sflag, size = 0x4, scoped, tag = 'scoped memory for tpu_custom_call.1']
    #allocation7 [shape = 'u8[65536]{0}', space=vmem, size = 0x10000, scoped, tag = 'output window, operand 0, single buffered']
    %7 = vsyncpa [#allocation3], 0
    %8 = vsyncpa [#allocation6], 0
    %9 = vsyncpa [#allocation4], 0
    // Predicated region
    $region2: #{tpu_custom_call.1} parent=1 // pred_check
      _
    $region3: #{tpu_custom_call.1} parent=1 // pred_check_branch
      %11 = sbr.rel (0) target = $region5
    $region4: #{tpu_custom_call.1} parent=1 // pred_region
      %s13 = ssub.s32 1024, 1024
      %14 = vsyncadd [#allocation3], %s13
      %s15 = sshll.u32 [#allocation2], 4
      %s16 = int_to_ptr.vmem [resolvable:$true] %s15
      %21 = dma.hbm_to_vmem [thread:$0]  %s0, 1024, %s16, [#allocation3], 64, 64, 4
    $region5: #{tpu_custom_call.1} parent=1 // pred_fallthru
      _
    // Predicated region
    $region6: #{tpu_custom_call.1} parent=1 // pred_check
      _
    $region7: #{tpu_custom_call.1} parent=1 // pred_check_branch
      %23 = sbr.rel (0) target = $region9
    $region8: #{tpu_custom_call.1} parent=1 // pred_region
      %s25 = ssub.s32 1024, 1024
      %26 = vsyncadd [#allocation6], %s25
      %s27 = sshll.u32 [#allocation5], 4
      %s28 = int_to_ptr.vmem [resolvable:$true] %s27
      %33 = dma.hbm_to_vmem [thread:$0]  %s1, 1024, %s28, [#allocation6], 64, 64, 4
    $region9: #{tpu_custom_call.1} parent=1 // pred_fallthru
      _
    // Predicated region
    $region10: #{tpu_custom_call.1} parent=1 // pred_check
      _
    $region11: #{tpu_custom_call.1} parent=1 // pred_check_branch
      %35 = sbr.rel (0) target = $region13
    $region12: #{tpu_custom_call.1} parent=1 // pred_region
      %36 = dma.done [#allocation3], 1024
    $region13: #{tpu_custom_call.1} parent=1 // pred_fallthru
      _
    // Predicated region
    $region14: #{tpu_custom_call.1} parent=1 // pred_check
      _
    $region15: #{tpu_custom_call.1} parent=1 // pred_check_branch
      %38 = sbr.rel (0) target = $region17
    $region16: #{tpu_custom_call.1} parent=1 // pred_region
      %39 = dma.done [#allocation6], 1024
    $region17: #{tpu_custom_call.1} parent=1 // pred_fallthru
      _
    %s41 = smul.u32 0, 128
    %s42 = smul.u32 0, 128
    %p43 = scmp.ge.s32.totalorder %s41, 12
    %p44 = scmp.ge.s32.totalorder %s42, 12
    %p45 = por %p43, %p44
    // Predicated region
    $region18: #{tpu_custom_call.1} parent=1 // pred_check
      %p46 = pneg %p45
    $region19: #{tpu_custom_call.1} parent=1 // pred_check_branch
      %48 = sbr.rel (%p46) target = $region21
    $region20: #{tpu_custom_call.1} parent=1 // pred_region
      %49 = vst [vmem:[#allocation7] sm:$0xff] 0.0
      %50 = vst [vmem:[#allocation7 + $0x8] sm:$0xff] 0.0
      %51 = vst [vmem:[#allocation7 + $0x10] sm:$0xff] 0.0
      %52 = vst [vmem:[#allocation7 + $0x18] sm:$0xff] 0.0
      %53 = vst [vmem:[#allocation7 + $0x20] sm:$0xff] 0.0
      %54 = vst [vmem:[#allocation7 + $0x28] sm:$0xff] 0.0
      %55 = vst [vmem:[#allocation7 + $0x30] sm:$0xff] 0.0
      %56 = vst [vmem:[#allocation7 + $0x38] sm:$0xff] 0.0
      %57 = vst [vmem:[#allocation7 + $0x40] sm:$0xff] 0.0
      %58 = vst [vmem:[#allocation7 + $0x48] sm:$0xff] 0.0
      %59 = vst [vmem:[#allocation7 + $0x50] sm:$0xff] 0.0
      %60 = vst [vmem:[#allocation7 + $0x58] sm:$0xff] 0.0
      %61 = vst [vmem:[#allocation7 + $0x60] sm:$0xff] 0.0
      %62 = vst [vmem:[#allocation7 + $0x68] sm:$0xff] 0.0
      %63 = vst [vmem:[#allocation7 + $0x70] sm:$0xff] 0.0
      %64 = vst [vmem:[#allocation7 + $0x78] sm:$0xff] 0.0
    $region21: #{tpu_custom_call.1} parent=1 // pred_fallthru
      _
    %p65 = pneg %p45
    // Predicated region
    $region22: #{tpu_custom_call.1} parent=1 // pred_check
      _
    $region23: #{tpu_custom_call.1} parent=1 // pred_check_branch
      %67 = sbr.rel (%p45) target = $region25
    $region24: #{tpu_custom_call.1} parent=1 // pred_region
      %v68 = vld [vmem:[#allocation2] sm:$0xf]
      %v69 = vld [vmem:[#allocation2 + $0x4] sm:$0xf]
      %v70 = vld [vmem:[#allocation2 + $0x8] sm:$0xf]
      %v71 = vld [vmem:[#allocation2 + $0xc] sm:$0xf]
      %v72 = vld [vmem:[#allocation2 + $0x10] sm:$0xf]
      %v73 = vld [vmem:[#allocation2 + $0x14] sm:$0xf]
      %v74 = vld [vmem:[#allocation2 + $0x18] sm:$0xf]
      %v75 = vld [vmem:[#allocation2 + $0x1c] sm:$0xf]
      %v76 = vld [vmem:[#allocation2 + $0x20] sm:$0xf]
      %v77 = vld [vmem:[#allocation2 + $0x24] sm:$0xf]
      %v78 = vld [vmem:[#allocation2 + $0x28] sm:$0xf]
      %v79 = vld [vmem:[#allocation2 + $0x2c] sm:$0xf]
      %v80 = vld [vmem:[#allocation2 + $0x30] sm:$0xf]
      %v81 = vld [vmem:[#allocation2 + $0x34] sm:$0xf]
      %v82 = vld [vmem:[#allocation2 + $0x38] sm:$0xf]
      %v83 = vld [vmem:[#allocation2 + $0x3c] sm:$0xf]
      %s84 = sshra.s32 %s42, 3
      %s85 = sand.u32 %s42, 7
      %s86 = smul.addr %s84, 4
      %s87 = scalar_lea.vmem [#allocation5], %s86
      %v88 = vld [vmem:[%s87] sm:$0xf]
      %v89 = vld [vmem:[%s87 + $0x4] sm:$0xf]
      %v90 = vld [vmem:[%s87 + $0x8] sm:$0xf]
      %v91 = vld [vmem:[%s87 + $0xc] sm:$0xf]
      %v92 = vld [vmem:[%s87 + $0x10] sm:$0xf]
      %v93 = vld [vmem:[%s87 + $0x14] sm:$0xf]
      %v94 = vld [vmem:[%s87 + $0x18] sm:$0xf]
      %v95 = vld [vmem:[%s87 + $0x1c] sm:$0xf]
      %v96 = vld [vmem:[%s87 + $0x20] sm:$0xf]
      %v97 = vld [vmem:[%s87 + $0x24] sm:$0xf]
      %v98 = vld [vmem:[%s87 + $0x28] sm:$0xf]
      %v99 = vld [vmem:[%s87 + $0x2c] sm:$0xf]
      %v100 = vld [vmem:[%s87 + $0x30] sm:$0xf]
      %v101 = vld [vmem:[%s87 + $0x34] sm:$0xf]
      %v102 = vld [vmem:[%s87 + $0x38] sm:$0xf]
      %v103 = vld [vmem:[%s87 + $0x3c] sm:$0xf]
      %v120 = vunpack.c.l.b16 %v68
      %v121 = vunpack.c.l.b16 %v69
      %v122 = vunpack.c.l.b16 %v70
      %v123 = vunpack.c.l.b16 %v71
      %v124 = vunpack.c.l.b16 %v72
      %v125 = vunpack.c.l.b16 %v73
      %v126 = vunpack.c.l.b16 %v74
      %v127 = vunpack.c.l.b16 %v75
      %v128 = vunpack.c.l.b16 %v76
      %v129 = vunpack.c.l.b16 %v77
      %v130 = vunpack.c.l.b16 %v78
      %v131 = vunpack.c.l.b16 %v79
      %v132 = vunpack.c.l.b16 %v80
      %v133 = vunpack.c.l.b16 %v81
      %v134 = vunpack.c.l.b16 %v82
      %v135 = vunpack.c.l.b16 %v83
      %v136 = vpack.c.b16 %v121, %v120
      %v137 = vpack.c.b16 %v123, %v122
      %v138 = vpack.c.b16 %v125, %v124
      %v139 = vpack.c.b16 %v127, %v126
      %v140 = vpack.c.b16 %v129, %v128
      %v141 = vpack.c.b16 %v131, %v130
      %v142 = vpack.c.b16 %v133, %v132
      %v143 = vpack.c.b16 %v135, %v134
      %v168 = vunpack.c.l.b16 %v88
      %v169 = vunpack.c.l.b16 %v89
      %v170 = vunpack.c.l.b16 %v90
      %v171 = vunpack.c.l.b16 %v91
      %v172 = vunpack.c.l.b16 %v92
      %v173 = vunpack.c.l.b16 %v93
      %v174 = vunpack.c.l.b16 %v94
      %v175 = vunpack.c.l.b16 %v95
      %v176 = vunpack.c.l.b16 %v96
      %v177 = vunpack.c.l.b16 %v97
      %v178 = vunpack.c.l.b16 %v98
      %v179 = vunpack.c.l.b16 %v99
      %v180 = vunpack.c.l.b16 %v100
      %v181 = vunpack.c.l.b16 %v101
      %v182 = vunpack.c.l.b16 %v102
      %v183 = vunpack.c.l.b16 %v103
      %v184 = vpack.c.b16 %v169, %v168
      %v185 = vpack.c.b16 %v171, %v170
      %v186 = vpack.c.b16 %v173, %v172
      %v187 = vpack.c.b16 %v175, %v174
      %v188 = vpack.c.b16 %v177, %v176
      %v189 = vpack.c.b16 %v179, %v178
      %v190 = vpack.c.b16 %v181, %v180
      %v191 = vpack.c.b16 %v183, %v182
      %200 = vmatprep.subr.bf16.mxu0 0
      %201 = vmatpush1.bf16.xpose.msra.mxu0 %v184
      %202 = vmatprep.subr.bf16.mxu0 0
      %203 = vmatpush1.bf16.xpose.msra.mxu0 %v185
      %204 = vmatprep.subr.bf16.mxu0 0
      %205 = vmatpush1.bf16.xpose.msra.mxu0 %v186
      %206 = vmatprep.subr.bf16.mxu0 0
      %207 = vmatpush1.bf16.xpose.msra.mxu0 %v187
      %208 = vmatprep.subr.bf16.mxu0 0
      %209 = vmatpush1.bf16.xpose.msra.mxu0 %v188
      %210 = vmatprep.subr.bf16.mxu0 0
      %211 = vmatpush1.bf16.xpose.msra.mxu0 %v189
      %212 = vmatprep.subr.bf16.mxu0 0
      %213 = vmatpush1.bf16.xpose.msra.mxu0 %v190
      %214 = vmatprep.subr.bf16.mxu0 0
      %215 = vmatpush1.bf16.xpose.msra.mxu0 %v191
      %216 = vmatprep.subr.bf16.mxu0 0
      %217 = vmatpush1.bf16.xpose.msra.mxu0 0
      %218 = vmatprep.subr.bf16.mxu0 0
      %219 = vmatpush1.bf16.xpose.msra.mxu0 0
      %220 = vmatprep.subr.bf16.mxu0 0
      %221 = vmatpush1.bf16.xpose.msra.mxu0 0
      %222 = vmatprep.subr.bf16.mxu0 0
      %223 = vmatpush1.bf16.xpose.msra.mxu0 0
      %224 = vmatprep.subr.bf16.mxu0 0
      %225 = vmatpush1.bf16.xpose.msra.mxu0 0
      %226 = vmatprep.subr.bf16.mxu0 0
      %227 = vmatpush1.bf16.xpose.msra.mxu0 0
      %228 = vmatprep.subr.bf16.mxu0 0
      %229 = vmatpush1.bf16.xpose.msra.mxu0 0
      %230 = vmatprep.subr.bf16.mxu0 0
      %231 = vmatpush1.bf16.xpose.msra.mxu0 0
      %232 = vmatprep.mubr.bf16.mxu0 0
      %233 = vmatmul.mubr.bf16.gmra.mrb[0].mxu0 %v136
      %v234 = vpop.f32.mrb[0].mxu0
      %v235 = vadd.f32 0.0, %v234
      %v236 = vpop.f32.mrb[0].mxu0
      %v237 = vpop.f32.mrb[0].mxu0
      %v238 = vadd.f32 0.0, %v237
      %v239 = vpop.f32.mrb[0].mxu0
      %240 = vmatprep.mubr.bf16.mxu0 0
      %241 = vmatmul.mubr.bf16.gmra.mrb[0].mxu0 %v137
      %v242 = vpop.f32.mrb[0].mxu0
      %v243 = vadd.f32 0.0, %v242
      %v244 = vpop.f32.mrb[0].mxu0
      %v245 = vpop.f32.mrb[0].mxu0
      %v246 = vadd.f32 0.0, %v245
      %v247 = vpop.f32.mrb[0].mxu0
      %248 = vmatprep.mubr.bf16.mxu0 0
      %249 = vmatmul.mubr.bf16.gmra.mrb[0].mxu0 %v138
      %v250 = vpop.f32.mrb[0].mxu0
      %v251 = vadd.f32 0.0, %v250
      %v252 = vpop.f32.mrb[0].mxu0
      %v253 = vpop.f32.mrb[0].mxu0
      %v254 = vadd.f32 0.0, %v253
      %v255 = vpop.f32.mrb[0].mxu0
      %256 = vmatprep.mubr.bf16.mxu0 0
      %257 = vmatmul.mubr.bf16.gmra.mrb[0].mxu0 %v139
      %v258 = vpop.f32.mrb[0].mxu0
      %v259 = vadd.f32 0.0, %v258
      %v260 = vpop.f32.mrb[0].mxu0
      %v261 = vpop.f32.mrb[0].mxu0
      %v262 = vadd.f32 0.0, %v261
      %v263 = vpop.f32.mrb[0].mxu0
      %264 = vmatprep.mubr.bf16.mxu0 0
      %265 = vmatmul.mubr.bf16.gmra.mrb[0].mxu0 %v140
      %v266 = vpop.f32.mrb[0].mxu0
      %v267 = vadd.f32 0.0, %v266
      %v268 = vpop.f32.mrb[0].mxu0
      %v269 = vpop.f32.mrb[0].mxu0
      %v270 = vadd.f32 0.0, %v269
      %v271 = vpop.f32.mrb[0].mxu0
      %272 = vmatprep.mubr.bf16.mxu0 0
      %273 = vmatmul.mubr.bf16.gmra.mrb[0].mxu0 %v141
      %v274 = vpop.f32.mrb[0].mxu0
      %v275 = vadd.f32 0.0, %v274
      %v276 = vpop.f32.mrb[0].mxu0
      %v277 = vpop.f32.mrb[0].mxu0
      %v278 = vadd.f32 0.0, %v277
      %v279 = vpop.f32.mrb[0].mxu0
      %280 = vmatprep.mubr.bf16.mxu0 0
      %281 = vmatmul.mubr.bf16.gmra.mrb[0].mxu0 %v142
      %v282 = vpop.f32.mrb[0].mxu0
      %v283 = vadd.f32 0.0, %v282
      %v284 = vpop.f32.mrb[0].mxu0
      %v285 = vpop.f32.mrb[0].mxu0
      %v286 = vadd.f32 0.0, %v285
      %v287 = vpop.f32.mrb[0].mxu0
      %288 = vmatprep.mubr.bf16.mxu0 0
      %289 = vmatmul.mubr.bf16.gmra.mrb[0].mxu0 %v143
      %v290 = vpop.f32.mrb[0].mxu0
      %v291 = vadd.f32 0.0, %v290
      %v292 = vpop.f32.mrb[0].mxu0
      %v293 = vpop.f32.mrb[0].mxu0
      %v294 = vadd.f32 0.0, %v293
      %v295 = vpop.f32.mrb[0].mxu0
      %296 = vdwg.mxu0
      %v297 = vxor.u32 %v235, 2147483648
      %v298 = vxor.u32 %v238, 2147483648
      %v299 = vxor.u32 %v243, 2147483648
      %v300 = vxor.u32 %v246, 2147483648
      %v301 = vxor.u32 %v251, 2147483648
      %v302 = vxor.u32 %v254, 2147483648
      %v303 = vxor.u32 %v259, 2147483648
      %v304 = vxor.u32 %v262, 2147483648
      %v305 = vxor.u32 %v267, 2147483648
      %v306 = vxor.u32 %v270, 2147483648
      %v307 = vxor.u32 %v275, 2147483648
      %v308 = vxor.u32 %v278, 2147483648
      %v309 = vxor.u32 %v283, 2147483648
      %v310 = vxor.u32 %v286, 2147483648
      %v311 = vxor.u32 %v291, 2147483648
      %v312 = vxor.u32 %v294, 2147483648
      %v313 = vmul.f32 %v297, 1.442695
      %v314 = vpow.pop %v313
      %v315 = vmul.f32 %v298, 1.442695
      %v316 = vpow.pop %v315
      %v317 = vmul.f32 %v299, 1.442695
      %v318 = vpow.pop %v317
      %v319 = vmul.f32 %v300, 1.442695
      %v320 = vpow.pop %v319
      %v321 = vmul.f32 %v301, 1.442695
      %v322 = vpow.pop %v321
      %v323 = vmul.f32 %v302, 1.442695
      %v324 = vpow.pop %v323
      %v325 = vmul.f32 %v303, 1.442695
      %v326 = vpow.pop %v325
      %v327 = vmul.f32 %v304, 1.442695
      %v328 = vpow.pop %v327
      %v329 = vmul.f32 %v305, 1.442695
      %v330 = vpow.pop %v329
      %v331 = vmul.f32 %v306, 1.442695
      %v332 = vpow.pop %v331
      %v333 = vmul.f32 %v307, 1.442695
      %v334 = vpow.pop %v333
      %v335 = vmul.f32 %v308, 1.442695
      %v336 = vpow.pop %v335
      %v337 = vmul.f32 %v309, 1.442695
      %v338 = vpow.pop %v337
      %v339 = vmul.f32 %v310, 1.442695
      %v340 = vpow.pop %v339
      %v341 = vmul.f32 %v311, 1.442695
      %v342 = vpow.pop %v341
      %v343 = vmul.f32 %v312, 1.442695
      %v344 = vpow.pop %v343
      %v345 = vadd.f32 %v314, 1.0
      %v346 = vadd.f32 %v316, 1.0
      %v347 = vadd.f32 %v318, 1.0
      %v348 = vadd.f32 %v320, 1.0
      %v349 = vadd.f32 %v322, 1.0
      %v350 = vadd.f32 %v324, 1.0
      %v351 = vadd.f32 %v326, 1.0
      %v352 = vadd.f32 %v328, 1.0
      %v353 = vadd.f32 %v330, 1.0
      %v354 = vadd.f32 %v332, 1.0
      %v355 = vadd.f32 %v334, 1.0
      %v356 = vadd.f32 %v336, 1.0
      %v357 = vadd.f32 %v338, 1.0
      %v358 = vadd.f32 %v340, 1.0
      %v359 = vadd.f32 %v342, 1.0
      %v360 = vadd.f32 %v344, 1.0
      %v361 = vrcp.pop %v345
      %v362 = vmul.f32 1.0, %v361
      %v363 = vrcp.pop %v346
      %v364 = vmul.f32 1.0, %v363
      %v365 = vrcp.pop %v347
      %v366 = vmul.f32 1.0, %v365
      %v367 = vrcp.pop %v348
      %v368 = vmul.f32 1.0, %v367
      %v369 = vrcp.pop %v349
      %v370 = vmul.f32 1.0, %v369
      %v371 = vrcp.pop %v350
      %v372 = vmul.f32 1.0, %v371
      %v373 = vrcp.pop %v351
      %v374 = vmul.f32 1.0, %v373
      %v375 = vrcp.pop %v352
      %v376 = vmul.f32 1.0, %v375
      %v377 = vrcp.pop %v353
      %v378 = vmul.f32 1.0, %v377
      %v379 = vrcp.pop %v354
      %v380 = vmul.f32 1.0, %v379
      %v381 = vrcp.pop %v355
      %v382 = vmul.f32 1.0, %v381
      %v383 = vrcp.pop %v356
      %v384 = vmul.f32 1.0, %v383
      %v385 = vrcp.pop %v357
      %v386 = vmul.f32 1.0, %v385
      %v387 = vrcp.pop %v358
      %v388 = vmul.f32 1.0, %v387
      %v389 = vrcp.pop %v359
      %v390 = vmul.f32 1.0, %v389
      %v391 = vrcp.pop %v360
      %v392 = vmul.f32 1.0, %v391
      %s393 = sadd.s32 %s41, 128
      %p394 = scmp.le.s32.totalorder %s393, 12
      %s395 = sadd.s32 %s42, 128
      %p396 = scmp.le.s32.totalorder %s395, 12
      %p397 = pnand %p394, %p396
      %p398 = pneg %p397
      %p399 = scmp.lt.s32.totalorder %s41, %s395
      %p400 = scmp.lt.s32.totalorder %s42, %s393
      %p401 = pnand %p399, %p400
      %p402 = pneg %p401
      %p403 = pneg %p402
      %p404 = pnand %p398, %p403
      %p405 = pneg %p404
      // Predicated region
      $region26: #{tpu_custom_call.1} parent=24 // pred_check
        _
      $region27: #{tpu_custom_call.1} parent=24 // pred_check_branch
        %407 = sbr.rel (%p404) target = $region29
      $region28: #{tpu_custom_call.1} parent=24 // pred_region
        %408 = vst [vmem:[#allocation7] sm:$0xff] %v362
        %409 = vst [vmem:[#allocation7 + $0x8] sm:$0xff] %v364
        %410 = vst [vmem:[#allocation7 + $0x10] sm:$0xff] %v366
        %411 = vst [vmem:[#allocation7 + $0x18] sm:$0xff] %v368
        %412 = vst [vmem:[#allocation7 + $0x20] sm:$0xff] %v370
        %413 = vst [vmem:[#allocation7 + $0x28] sm:$0xff] %v372
        %414 = vst [vmem:[#allocation7 + $0x30] sm:$0xff] %v374
        %415 = vst [vmem:[#allocation7 + $0x38] sm:$0xff] %v376
        %416 = vst [vmem:[#allocation7 + $0x40] sm:$0xff] %v378
        %417 = vst [vmem:[#allocation7 + $0x48] sm:$0xff] %v380
        %418 = vst [vmem:[#allocation7 + $0x50] sm:$0xff] %v382
        %419 = vst [vmem:[#allocation7 + $0x58] sm:$0xff] %v384
        %420 = vst [vmem:[#allocation7 + $0x60] sm:$0xff] %v386
        %421 = vst [vmem:[#allocation7 + $0x68] sm:$0xff] %v388
        %422 = vst [vmem:[#allocation7 + $0x70] sm:$0xff] %v390
        %423 = vst [vmem:[#allocation7 + $0x78] sm:$0xff] %v392
      $region29: #{tpu_custom_call.1} parent=24 // pred_fallthru
        _
      %p424 = pneg %p405
      // Predicated region
      $region30: #{tpu_custom_call.1} parent=24 // pred_check
        _
      $region31: #{tpu_custom_call.1} parent=24 // pred_check_branch
        %426 = sbr.rel (%p405) target = $region33
      $region32: #{tpu_custom_call.1} parent=24 // pred_region
        %v427 = vlaneseq
        %v428 = vshrl.u32 %v427, 7
        %v429 = vadd.s32 %v428, 8
        %v430 = vadd.s32 %v428, 16
        %v431 = vadd.s32 %v428, 24
        %v432 = vadd.s32 %v428, 32
        %v433 = vadd.s32 %v428, 40
        %v434 = vadd.s32 %v428, 48
        %v435 = vadd.s32 %v428, 56
        %v436 = vadd.s32 %v428, 64
        %v437 = vadd.s32 %v428, 72
        %v438 = vadd.s32 %v428, 80
        %v439 = vadd.s32 %v428, 88
        %v440 = vadd.s32 %v428, 96
        %v441 = vadd.s32 %v428, 104
        %v442 = vadd.s32 %v428, 112
        %v443 = vadd.s32 %v428, 120
        %v444 = vstv %s41
        %v445 = vadd.s32 %v428, %v444
        %v446 = vadd.s32 %v429, %v444
        %v447 = vadd.s32 %v430, %v444
        %v448 = vadd.s32 %v431, %v444
        %v449 = vadd.s32 %v432, %v444
        %v450 = vadd.s32 %v433, %v444
        %v451 = vadd.s32 %v434, %v444
        %v452 = vadd.s32 %v435, %v444
        %v453 = vadd.s32 %v436, %v444
        %v454 = vadd.s32 %v437, %v444
        %v455 = vadd.s32 %v438, %v444
        %v456 = vadd.s32 %v439, %v444
        %v457 = vadd.s32 %v440, %v444
        %v458 = vadd.s32 %v441, %v444
        %v459 = vadd.s32 %v442, %v444
        %v460 = vadd.s32 %v443, %v444
        %v461 = vlaneseq
        %v462 = vand.u32 %v461, 127
        %v463 = vstv %s42
        %v464 = vadd.s32 %v462, %v463
        %vm465 = vcmp.lt.s32.totalorder %v445, 12
        %vm466 = vcmp.lt.s32.totalorder %v446, 12
        %vm467 = vcmp.lt.s32.totalorder %v447, 12
        %vm468 = vcmp.lt.s32.totalorder %v448, 12
        %vm469 = vcmp.lt.s32.totalorder %v449, 12
        %vm470 = vcmp.lt.s32.totalorder %v450, 12
        %vm471 = vcmp.lt.s32.totalorder %v451, 12
        %vm472 = vcmp.lt.s32.totalorder %v452, 12
        %vm473 = vcmp.lt.s32.totalorder %v453, 12
        %vm474 = vcmp.lt.s32.totalorder %v454, 12
        %vm475 = vcmp.lt.s32.totalorder %v455, 12
        %vm476 = vcmp.lt.s32.totalorder %v456, 12
        %vm477 = vcmp.lt.s32.totalorder %v457, 12
        %vm478 = vcmp.lt.s32.totalorder %v458, 12
        %vm479 = vcmp.lt.s32.totalorder %v459, 12
        %vm480 = vcmp.lt.s32.totalorder %v460, 12
        %vm481 = vcmp.lt.s32.totalorder %v464, 12
        %vm482 = vmand %vm465, %vm481
        %vm483 = vmand %vm466, %vm481
        %vm484 = vmand %vm467, %vm481
        %vm485 = vmand %vm468, %vm481
        %vm486 = vmand %vm469, %vm481
        %vm487 = vmand %vm470, %vm481
        %vm488 = vmand %vm471, %vm481
        %vm489 = vmand %vm472, %vm481
        %vm490 = vmand %vm473, %vm481
        %vm491 = vmand %vm474, %vm481
        %vm492 = vmand %vm475, %vm481
        %vm493 = vmand %vm476, %vm481
        %vm494 = vmand %vm477, %vm481
        %vm495 = vmand %vm478, %vm481
        %vm496 = vmand %vm479, %vm481
        %vm497 = vmand %vm480, %vm481
        %vm498 = vcmp.ne.s32.totalorder %v445, %v464
        %vm499 = vcmp.ne.s32.totalorder %v446, %v464
        %vm500 = vcmp.ne.s32.totalorder %v447, %v464
        %vm501 = vcmp.ne.s32.totalorder %v448, %v464
        %vm502 = vcmp.ne.s32.totalorder %v449, %v464
        %vm503 = vcmp.ne.s32.totalorder %v450, %v464
        %vm504 = vcmp.ne.s32.totalorder %v451, %v464
        %vm505 = vcmp.ne.s32.totalorder %v452, %v464
        %vm506 = vcmp.ne.s32.totalorder %v453, %v464
        %vm507 = vcmp.ne.s32.totalorder %v454, %v464
        %vm508 = vcmp.ne.s32.totalorder %v455, %v464
        %vm509 = vcmp.ne.s32.totalorder %v456, %v464
        %vm510 = vcmp.ne.s32.totalorder %v457, %v464
        %vm511 = vcmp.ne.s32.totalorder %v458, %v464
        %vm512 = vcmp.ne.s32.totalorder %v459, %v464
        %vm513 = vcmp.ne.s32.totalorder %v460, %v464
        %vm514 = vmand %vm482, %vm498
        %vm515 = vmand %vm483, %vm499
        %vm516 = vmand %vm484, %vm500
        %vm517 = vmand %vm485, %vm501
        %vm518 = vmand %vm486, %vm502
        %vm519 = vmand %vm487, %vm503
        %vm520 = vmand %vm488, %vm504
        %vm521 = vmand %vm489, %vm505
        %vm522 = vmand %vm490, %vm506
        %vm523 = vmand %vm491, %vm507
        %vm524 = vmand %vm492, %vm508
        %vm525 = vmand %vm493, %vm509
        %vm526 = vmand %vm494, %vm510
        %vm527 = vmand %vm495, %vm511
        %vm528 = vmand %vm496, %vm512
        %vm529 = vmand %vm497, %vm513
        %v530 = vsel %vm514, %v362, 0.0
        %v531 = vsel %vm515, %v364, 0.0
        %v532 = vsel %vm516, %v366, 0.0
        %v533 = vsel %vm517, %v368, 0.0
        %v534 = vsel %vm518, %v370, 0.0
        %v535 = vsel %vm519, %v372, 0.0
        %v536 = vsel %vm520, %v374, 0.0
        %v537 = vsel %vm521, %v376, 0.0
        %v538 = vsel %vm522, %v378, 0.0
        %v539 = vsel %vm523, %v380, 0.0
        %v540 = vsel %vm524, %v382, 0.0
        %v541 = vsel %vm525, %v384, 0.0
        %v542 = vsel %vm526, %v386, 0.0
        %v543 = vsel %vm527, %v388, 0.0
        %v544 = vsel %vm528, %v390, 0.0
        %v545 = vsel %vm529, %v392, 0.0
        %546 = vst [vmem:[#allocation7] sm:$0xff] %v530
        %547 = vst [vmem:[#allocation7 + $0x8] sm:$0xff] %v531
        %548 = vst [vmem:[#allocation7 + $0x10] sm:$0xff] %v532
        %549 = vst [vmem:[#allocation7 + $0x18] sm:$0xff] %v533
        %550 = vst [vmem:[#allocation7 + $0x20] sm:$0xff] %v534
        %551 = vst [vmem:[#allocation7 + $0x28] sm:$0xff] %v535
        %552 = vst [vmem:[#allocation7 + $0x30] sm:$0xff] %v536
        %553 = vst [vmem:[#allocation7 + $0x38] sm:$0xff] %v537
        %554 = vst [vmem:[#allocation7 + $0x40] sm:$0xff] %v538
        %555 = vst [vmem:[#allocation7 + $0x48] sm:$0xff] %v539
        %556 = vst [vmem:[#allocation7 + $0x50] sm:$0xff] %v540
        %557 = vst [vmem:[#allocation7 + $0x58] sm:$0xff] %v541
        %558 = vst [vmem:[#allocation7 + $0x60] sm:$0xff] %v542
        %559 = vst [vmem:[#allocation7 + $0x68] sm:$0xff] %v543
        %560 = vst [vmem:[#allocation7 + $0x70] sm:$0xff] %v544
        %561 = vst [vmem:[#allocation7 + $0x78] sm:$0xff] %v545
      $region33: #{tpu_custom_call.1} parent=24 // pred_fallthru
        _
    $region25: #{tpu_custom_call.1} parent=1 // pred_fallthru
      _
    // Predicated region
    $region34: #{tpu_custom_call.1} parent=1 // pred_check
      _
    $region35: #{tpu_custom_call.1} parent=1 // pred_check_branch
      %563 = sbr.rel (0) target = $region37
    $region36: #{tpu_custom_call.1} parent=1 // pred_region
      %s565 = ssub.s32 2048, 2048
      %566 = vsyncadd [#allocation4], %s565
      %s567 = sshll.u32 [#allocation7], 4
      %s568 = int_to_ptr.vmem [resolvable:$true] %s567
      %573 = dma.vmem_to_hbm [thread:$0]  %s568, 2048, %s2, [#allocation4], 128, 128, 8
    $region37: #{tpu_custom_call.1} parent=1 // pred_fallthru
      _
    // Predicated region
    $region38: #{tpu_custom_call.1} parent=1 // pred_check
      _
    $region39: #{tpu_custom_call.1} parent=1 // pred_check_branch
      %575 = sbr.rel (0) target = $region41
    $region40: #{tpu_custom_call.1} parent=1 // pred_region
      %576 = dma.done [#allocation4], 2048
    $region41: #{tpu_custom_call.1} parent=1 // pred_fallthru
      _
    %577 = vsyncpa [#allocation3], 1
    %578 = vsyncpa [#allocation6], 1
    %579 = vsyncpa [#allocation4], 1

</llo_original>
